<compile_context>
chip_gen: v5e
topology: v5e:2x2
jax: 0.10.0
libtpu: 0.0.40
codegen_flags: <defaults>
</compile_context>

<pallas_src>
import jax
import jax.numpy as jnp
from jax import lax
from jax.experimental import pallas as pl
from jax.experimental.pallas import tpu as pltpu


_EPS = 1e-8                  # F.cosine_similarity eps
_EPS2 = _EPS * _EPS
_TR_MAX = 1024               # rows of 128 points per grid step
_VEC_DTYPE = jnp.bfloat16    # streaming dtype for gradient / gt_normals


def _tensorcores_per_chip() -> int:
    """2 on dual-TensorCore chips (v4, v5p, v7x), else 1 (v5e, v6e, other)."""
    try:
        dev = jax.devices()[0]
        if dev.platform != "tpu":
            return 1
        kind = str(getattr(dev, "device_kind", "")).lower()
        if "v7" in kind or "v4" in kind or "v5p" in kind:
            return 2
        if kind.strip() in ("tpu v5", "tpu v5p"):
            return 2
    except Exception:
        pass
    return 1


def _round_up(a: int, b: int) -> int:
    return -(-a // b) * b


def _siren_sdf_loss_kernel(gt_ref, pred_ref, vec_ref, acc_ref):
    """gt/pred: (TR,128) f32 point tiles; vec: (6,TR,128) channel-major
    [gx,gy,gz,nx,ny,nz] (bf16, upcast in-kernel); acc: (32,128) f32 resident
    partial sums (rows 0:8 grad, 8:16 sdf, 16:24 normal, 24:32 inter)."""

    @pl.when(pl.program_id(1) == 0)
    def _init():
        acc_ref[...] = jnp.zeros_like(acc_ref)

    f32 = jnp.float32
    gt = gt_ref[...]
    abs_pred = jnp.abs(pred_ref[...])
    # Upcast bf16 channels to f32 before any math (v5e VPU has no bf16).
    gx = vec_ref[0].astype(f32)
    gy = vec_ref[1].astype(f32)
    gz = vec_ref[2].astype(f32)
    nx = vec_ref[3].astype(f32)
    ny = vec_ref[4].astype(f32)
    nz = vec_ref[5].astype(f32)

    on_surf = gt != -1.0

    gss = gx * gx + gy * gy + gz * gz
    nss = nx * nx + ny * ny + nz * nz
    dot = gx * nx + gy * ny + gz * nz

    # cosine_similarity(eps=1e-8): dot / (max(|g|,eps) * max(|n|,eps));
    # the two rsqrt's fused into a single EUP op.
    cos = dot * lax.rsqrt(jnp.maximum(gss, _EPS2) * jnp.maximum(nss, _EPS2))
    g_norm = jnp.sqrt(gss)   # exact sqrt kept for the eikonal term

    grad_c = jnp.abs(g_norm - 1.0)
    sdf_c = jnp.where(on_surf, abs_pred, 0.0)
    normal_c = jnp.where(on_surf, 1.0 - cos, 0.0)
    inter_c = jnp.where(on_surf, 0.0, jnp.exp(-100.0 * abs_pred))

    def rsum(x):
        # (TR,128) -> (8,128): layout-free reshape + axis-0 sum = pure VALU
        # vector adds (no XLU cross-sublane reduce).
        return jnp.sum(x.reshape(-1, 8, 128), axis=0)

    # Aligned full-(8,128)-tile read-modify-writes (no masked vst.msk).
    acc_ref[0:8, :] += rsum(grad_c)
    acc_ref[8:16, :] += rsum(sdf_c)
    acc_ref[16:24, :] += rsum(normal_c)
    acc_ref[24:32, :] += rsum(inter_c)


@jax.jit
def siren_sdf_loss(gt_sdf, gt_normals, pred_sdf, gradient,
                   lambda_1, lambda_2, lambda_3):
    """gt_sdf/pred_sdf: (B,N,1); gt_normals/gradient: (B,N,3). Returns dict."""
    B, N, _ = gt_sdf.shape
    M = B * N
    f32 = jnp.float32

    R = -(-M // 128)                         # rows of 128 points
    nc = min(_tensorcores_per_chip(), max(1, R // 16))
    rows_per_core = _round_up(-(-R // nc), 16)          # mult of 16 (bf16 tiles)
    S = -(-rows_per_core // _TR_MAX)                     # grid steps per core
    TR = _round_up(-(-rows_per_core // S), 16)           # rows per step
    Rp = nc * S * TR
    Mp = Rp * 128

    # gt / pred: free reshapes of (B,N,1) -> (Rp,128); no transpose needed.
    gt = gt_sdf.reshape(M).astype(f32)
    pred = pred_sdf.reshape(M).astype(f32)
    # gradient + normals: one channel-major stack (the only transpose left).
    vec = jnp.concatenate([gradient, gt_normals], axis=-1).reshape(M, 6).astype(f32)

    if Mp > M:
        # Constraint-neutral padding (kept in f32 so the exact compares hold):
        #   gt=-1 -> off-surface zeroes sdf/normal terms,
        #   pred=1e3 -> exp(-100*1e3) underflows to exactly 0,
        #   unit gradient -> | |g|-1 | == 0 (1,0 exactly representable in bf16).
        gt = jnp.concatenate([gt, jnp.full((Mp - M,), -1.0, f32)])
        pred = jnp.concatenate([pred, jnp.full((Mp - M,), 1e3, f32)])
        pad_vec = jnp.broadcast_to(
            jnp.array([1.0, 0.0, 0.0, 1.0, 0.0, 0.0], f32), (Mp - M, 6))
        vec = jnp.concatenate([vec, pad_vec], axis=0)

    gt = gt.reshape(Rp, 128)
    pred = pred.reshape(Rp, 128)
    vec = vec.astype(_VEC_DTYPE).T.reshape(6, Rp, 128)

    vec_bytes = 6 * Mp * jnp.dtype(_VEC_DTYPE).itemsize
    cost = pl.CostEstimate(
        flops=30 * Mp,
        transcendentals=3 * Mp,
        bytes_accessed=8 * Mp + vec_bytes + nc * 32 * 128 * 4)

    partials = pl.pallas_call(
        _siren_sdf_loss_kernel,
        out_shape=jax.ShapeDtypeStruct((nc * 32, 128), jnp.float32),
        grid=(nc, S),
        in_specs=[
            pl.BlockSpec((TR, 128), lambda c, i: (c * S + i, 0)),
            pl.BlockSpec((TR, 128), lambda c, i: (c * S + i, 0)),
            pl.BlockSpec((6, TR, 128), lambda c, i: (0, c * S + i, 0)),
        ],
        out_specs=pl.BlockSpec((32, 128), lambda c, i: (c, 0)),
        compiler_params=pltpu.CompilerParams(
            dimension_semantics=("parallel", "arbitrary")),
        cost_estimate=cost,
    )(gt, pred, vec)

    # Final cross-core / cross-sublane / cross-lane reductions + scaling (XLA).
    sums = jnp.sum(partials.reshape(nc, 4, 8, 128), axis=(0, 2, 3))   # (4,)
    inv_m = 1.0 / M
    return {
        'grad': sums[0] * (lambda_1 * inv_m),
        'sdf': sums[1] * (lambda_2 * inv_m),
        'normal': sums[2] * (lambda_3 * inv_m),
        'inter': sums[3] * (lambda_3 * inv_m),
    }


# ----------------------- glue: tiny SIREN + autograd ------------------------
# TODO(synk): torch.autograd.grad over an arbitrary upstream graph has no
# Pallas equivalent; the gradient d(pred_sdf)/d(coords) is produced with
# jax.grad on a small SIREN MLP here.

def siren_init(key, in_dim=3, hidden=32, out_dim=1):
    ks = jax.random.split(key, 6)
    w0 = 30.0
    c0 = 1.0 / in_dim
    c1 = jnp.sqrt(6.0 / hidden) / w0
    return {
        'W0': jax.random.uniform(ks[0], (in_dim, hidden), minval=-c0, maxval=c0),
        'b0': jax.random.uniform(ks[1], (hidden,), minval=-c0, maxval=c0),
        'W1': jax.random.uniform(ks[2], (hidden, hidden), minval=-c1, maxval=c1),
        'b1': jax.random.uniform(ks[3], (hidden,), minval=-c1, maxval=c1),
        'W2': jax.random.uniform(ks[4], (hidden, out_dim), minval=-c1, maxval=c1),
        'b2': jax.random.uniform(ks[5], (out_dim,), minval=-c1, maxval=c1),
    }


def siren_apply(params, coords):
    h = jnp.sin(30.0 * (coords @ params['W0'] + params['b0']))
    h = jnp.sin(30.0 * (h @ params['W1'] + params['b1']))
    return h @ params['W2'] + params['b2']          # (B,N,1)


def ref_loss(gt_sdf, gt_normals, pred_sdf, gradient, l1, l2, l3):
    g_norm = jnp.linalg.norm(gradient, axis=-1)
    grad_c = jnp.abs(g_norm - 1.0)
    on = gt_sdf != -1.0
    sdf_c = jnp.where(on, pred_sdf, 0.0)
    n_norm = jnp.linalg.norm(gt_normals, axis=-1)
    cos = jnp.sum(gradient * gt_normals, -1) / (
        jnp.maximum(g_norm, _EPS) * jnp.maximum(n_norm, _EPS))
    normal_c = jnp.where(on, (1.0 - cos)[..., None], 0.0)
    inter_c = jnp.where(on, 0.0, jnp.exp(-100.0 * jnp.abs(pred_sdf)))
    return {'grad': grad_c.mean() * l1, 'sdf': jnp.abs(sdf_c).mean() * l2,
            'normal': normal_c.mean() * l3, 'inter': inter_c.mean() * l3}


if __name__ == "__main__":
    key = jax.random.PRNGKey(0)
    k_coords, k_sdf, k_nrm, k_mask, k_params = jax.random.split(key, 5)

    B, N = 2, 256
    lambda_1, lambda_2, lambda_3 = 5.0e1, 3.0e3, 1.0e2

    coords = jax.random.uniform(k_coords, (B, N, 3), minval=-1.0, maxval=1.0)

    # Half of the points "on surface" (gt_sdf != -1), half off (gt_sdf == -1).
    on_surface = jax.random.bernoulli(k_mask, 0.5, (B, N, 1))
    gt_sdf = jnp.where(
        on_surface,
        jax.random.uniform(k_sdf, (B, N, 1), minval=-0.1, maxval=0.1),
        -1.0)
    raw_n = jax.random.normal(k_nrm, (B, N, 3))
    gt_normals = raw_n / jnp.linalg.norm(raw_n, axis=-1, keepdims=True)

    params = siren_init(k_params)
    pred_sdf = siren_apply(params, coords)                                 # (B,N,1)
    gradient = jax.grad(lambda c: siren_apply(params, c).sum())(coords)    # (B,N,3)

    losses = siren_sdf_loss(gt_sdf, gt_normals, pred_sdf, gradient,
                            lambda_1, lambda_2, lambda_3)
    losses = jax.block_until_ready(losses)

    # Tight check vs. a reference fed the same bf16-rounded vector streams
    # (isolates kernel math from the deliberate bf16-streaming quantization),
    # plus a loose check vs. the full-f32 reference (bf16 error bound).
    grad_q = gradient.astype(_VEC_DTYPE).astype(jnp.float32)
    nrm_q = gt_normals.astype(_VEC_DTYPE).astype(jnp.float32)
    want_q = ref_loss(gt_sdf, nrm_q, pred_sdf, grad_q,
                      lambda_1, lambda_2, lambda_3)
    want_f = ref_loss(gt_sdf, gt_normals, pred_sdf, gradient,
                      lambda_1, lambda_2, lambda_3)
    for name in ('grad', 'sdf', 'normal', 'inter'):
        got = float(losses[name])
        wq, wf = float(want_q[name]), float(want_f[name])
        assert abs(got - wq) <= 1e-3 * max(1.0, abs(wq)), (name, got, wq)
        assert abs(got - wf) <= 5e-2 * max(1.0, abs(wf)), (name, got, wf)

    print("KERNEL_OK")
</pallas_src>

<mosaic_0001>
module attributes {stable_mosaic.version = 11 : i64} {
  func.func @_siren_sdf_loss_kernel(%arg0: i32, %arg1: i32, %arg2: memref<16x128xf32, #tpu.memory_space<vmem>>, %arg3: memref<16x128xf32, #tpu.memory_space<vmem>>, %arg4: memref<6x16x128xbf16, #tpu.memory_space<vmem>>, %arg5: memref<32x128xf32, #tpu.memory_space<vmem>>) attributes {dimension_semantics = [#tpu.dimension_semantics<parallel>, #tpu.dimension_semantics<arbitrary>], iteration_bounds = array<i64: 1, 1>, scalar_prefetch = 0 : i64, scratch_operands = 0 : i64, tpu.core_type = #tpu.core_type<tc>, window_params = [{transform_indices = @transform_0, window_bounds = array<i64: 16, 128>}, {transform_indices = @transform_1, window_bounds = array<i64: 16, 128>}, {transform_indices = @transform_2, window_bounds = array<i64: 6, 16, 128>}, {transform_indices = @transform_3, window_bounds = array<i64: 32, 128>}]} {
    %c0_i32 = arith.constant 0 : i32
    %0 = arith.cmpi eq, %arg1, %c0_i32 : i32
    %1 = arith.extui %0 : i1 to i32
    %c0_i32_0 = arith.constant 0 : i32
    %2 = arith.cmpi ne, %1, %c0_i32_0 : i32
    scf.if %2 {
      %cst_42 = arith.constant 0.000000e+00 : f32
      %83 = vector.broadcast %cst_42 : f32 to vector<32x128xf32>
      %c0_43 = arith.constant 0 : index
      %c0_44 = arith.constant 0 : index
      %84 = vector.load %arg5[%c0_43, %c0_44] : memref<32x128xf32, #tpu.memory_space<vmem>>, vector<32x128xf32>
      tpu.vector_store %arg5[%c0_43, %c0_44], %83 {strides = array<i32>} : memref<32x128xf32, #tpu.memory_space<vmem>>, vector<32x128xf32>,
    } else {
    }
    %c0 = arith.constant 0 : index
    %c0_1 = arith.constant 0 : index
    %3 = vector.load %arg2[%c0, %c0_1] : memref<16x128xf32, #tpu.memory_space<vmem>>, vector<16x128xf32>
    %c0_2 = arith.constant 0 : index
    %c0_3 = arith.constant 0 : index
    %4 = vector.load %arg3[%c0_2, %c0_3] : memref<16x128xf32, #tpu.memory_space<vmem>>, vector<16x128xf32>
    %5 = math.absf %4 : vector<16x128xf32>
    %c0_4 = arith.constant 0 : index
    %c0_5 = arith.constant 0 : index
    %c0_6 = arith.constant 0 : index
    %6 = vector.load %arg4[%c0_4, %c0_5, %c0_6] : memref<6x16x128xbf16, #tpu.memory_space<vmem>>, vector<1x16x128xbf16>
    %7 = vector.shape_cast %6 : vector<1x16x128xbf16> to vector<16x128xbf16>
    %8 = arith.extf %7 : vector<16x128xbf16> to vector<16x128xf32>
    %c1 = arith.constant 1 : index
    %c0_7 = arith.constant 0 : index
    %c0_8 = arith.constant 0 : index
    %9 = vector.load %arg4[%c1, %c0_7, %c0_8] : memref<6x16x128xbf16, #tpu.memory_space<vmem>>, vector<1x16x128xbf16>
    %10 = vector.shape_cast %9 : vector<1x16x128xbf16> to vector<16x128xbf16>
    %11 = arith.extf %10 : vector<16x128xbf16> to vector<16x128xf32>
    %c2 = arith.constant 2 : index
    %c0_9 = arith.constant 0 : index
    %c0_10 = arith.constant 0 : index
    %12 = vector.load %arg4[%c2, %c0_9, %c0_10] : memref<6x16x128xbf16, #tpu.memory_space<vmem>>, vector<1x16x128xbf16>
    %13 = vector.shape_cast %12 : vector<1x16x128xbf16> to vector<16x128xbf16>
    %14 = arith.extf %13 : vector<16x128xbf16> to vector<16x128xf32>
    %c3 = arith.constant 3 : index
    %c0_11 = arith.constant 0 : index
    %c0_12 = arith.constant 0 : index
    %15 = vector.load %arg4[%c3, %c0_11, %c0_12] : memref<6x16x128xbf16, #tpu.memory_space<vmem>>, vector<1x16x128xbf16>
    %16 = vector.shape_cast %15 : vector<1x16x128xbf16> to vector<16x128xbf16>
    %17 = arith.extf %16 : vector<16x128xbf16> to vector<16x128xf32>
    %c4 = arith.constant 4 : index
    %c0_13 = arith.constant 0 : index
    %c0_14 = arith.constant 0 : index
    %18 = vector.load %arg4[%c4, %c0_13, %c0_14] : memref<6x16x128xbf16, #tpu.memory_space<vmem>>, vector<1x16x128xbf16>
    %19 = vector.shape_cast %18 : vector<1x16x128xbf16> to vector<16x128xbf16>
    %20 = arith.extf %19 : vector<16x128xbf16> to vector<16x128xf32>
    %c5 = arith.constant 5 : index
    %c0_15 = arith.constant 0 : index
    %c0_16 = arith.constant 0 : index
    %21 = vector.load %arg4[%c5, %c0_15, %c0_16] : memref<6x16x128xbf16, #tpu.memory_space<vmem>>, vector<1x16x128xbf16>
    %22 = vector.shape_cast %21 : vector<1x16x128xbf16> to vector<16x128xbf16>
    %23 = arith.extf %22 : vector<16x128xbf16> to vector<16x128xf32>
    %cst = arith.constant -1.000000e+00 : f32
    %24 = vector.broadcast %cst : f32 to vector<16x128xf32>
    %25 = arith.cmpf one, %3, %24 : vector<16x128xf32>
    %26 = arith.mulf %8, %8 : vector<16x128xf32>
    %27 = arith.mulf %11, %11 : vector<16x128xf32>
    %28 = arith.addf %26, %27 : vector<16x128xf32>
    %29 = arith.mulf %14, %14 : vector<16x128xf32>
    %30 = arith.addf %28, %29 : vector<16x128xf32>
    %31 = arith.mulf %17, %17 : vector<16x128xf32>
    %32 = arith.mulf %20, %20 : vector<16x128xf32>
    %33 = arith.addf %31, %32 : vector<16x128xf32>
    %34 = arith.mulf %23, %23 : vector<16x128xf32>
    %35 = arith.addf %33, %34 : vector<16x128xf32>
    %36 = arith.mulf %8, %17 : vector<16x128xf32>
    %37 = arith.mulf %11, %20 : vector<16x128xf32>
    %38 = arith.addf %36, %37 : vector<16x128xf32>
    %39 = arith.mulf %14, %23 : vector<16x128xf32>
    %40 = arith.addf %38, %39 : vector<16x128xf32>
    %cst_17 = arith.constant 1.000000e-16 : f32
    %41 = vector.broadcast %cst_17 : f32 to vector<16x128xf32>
    %42 = arith.maximumf %30, %41 : vector<16x128xf32>
    %cst_18 = arith.constant 1.000000e-16 : f32
    %43 = vector.broadcast %cst_18 : f32 to vector<16x128xf32>
    %44 = arith.maximumf %35, %43 : vector<16x128xf32>
    %45 = arith.mulf %42, %44 : vector<16x128xf32>
    %46 = math.rsqrt %45 : vector<16x128xf32>
    %47 = arith.mulf %40, %46 : vector<16x128xf32>
    %48 = math.sqrt %30 : vector<16x128xf32>
    %cst_19 = arith.constant 1.000000e+00 : f32
    %49 = vector.broadcast %cst_19 : f32 to vector<16x128xf32>
    %50 = arith.subf %48, %49 : vector<16x128xf32>
    %51 = math.absf %50 : vector<16x128xf32>
    %cst_20 = arith.constant 0.000000e+00 : f32
    %52 = vector.broadcast %cst_20 : f32 to vector<16x128xf32>
    %53 = arith.select %25, %5, %52 : vector<16x128xi1>, vector<16x128xf32>
    %cst_21 = arith.constant 1.000000e+00 : f32
    %54 = vector.broadcast %cst_21 : f32 to vector<16x128xf32>
    %55 = arith.subf %54, %47 : vector<16x128xf32>
    %cst_22 = arith.constant 0.000000e+00 : f32
    %56 = vector.broadcast %cst_22 : f32 to vector<16x128xf32>
    %57 = arith.select %25, %55, %56 : vector<16x128xi1>, vector<16x128xf32>
    %cst_23 = arith.constant -1.000000e+02 : f32
    %58 = vector.broadcast %cst_23 : f32 to vector<16x128xf32>
    %59 = arith.mulf %58, %5 : vector<16x128xf32>
    %60 = math.exp %59 : vector<16x128xf32>
    %cst_24 = arith.constant 0.000000e+00 : f32
    %61 = vector.broadcast %cst_24 : f32 to vector<16x128xf32>
    %62 = arith.select %25, %61, %60 : vector<16x128xi1>, vector<16x128xf32>
    %c0_25 = arith.constant 0 : index
    %c0_26 = arith.constant 0 : index
    %63 = vector.load %arg5[%c0_25, %c0_26] : memref<32x128xf32, #tpu.memory_space<vmem>>, vector<8x128xf32>
    %64 = vector.shape_cast %51 : vector<16x128xf32> to vector<2x8x128xf32>
    %cst_27 = arith.constant dense<0.000000e+00> : vector<8x128xf32>
    %65 = vector.multi_reduction <add>, %64, %cst_27 [0] : vector<2x8x128xf32> to vector<8x128xf32>
    %66 = arith.addf %63, %65 : vector<8x128xf32>
    %c0_28 = arith.constant 0 : index
    %c0_29 = arith.constant 0 : index
    %67 = vector.load %arg5[%c0_28, %c0_29] : memref<32x128xf32, #tpu.memory_space<vmem>>, vector<8x128xf32>
    tpu.vector_store %arg5[%c0_28, %c0_29], %66 {strides = array<i32>} : memref<32x128xf32, #tpu.memory_space<vmem>>, vector<8x128xf32>,
    %c8 = arith.constant 8 : index
    %c0_30 = arith.constant 0 : index
    %68 = vector.load %arg5[%c8, %c0_30] : memref<32x128xf32, #tpu.memory_space<vmem>>, vector<8x128xf32>
    %69 = vector.shape_cast %53 : vector<16x128xf32> to vector<2x8x128xf32>
    %cst_31 = arith.constant dense<0.000000e+00> : vector<8x128xf32>
    %70 = vector.multi_reduction <add>, %69, %cst_31 [0] : vector<2x8x128xf32> to vector<8x128xf32>
    %71 = arith.addf %68, %70 : vector<8x128xf32>
    %c8_32 = arith.constant 8 : index
    %c0_33 = arith.constant 0 : index
    %72 = vector.load %arg5[%c8_32, %c0_33] : memref<32x128xf32, #tpu.memory_space<vmem>>, vector<8x128xf32>
    tpu.vector_store %arg5[%c8_32, %c0_33], %71 {strides = array<i32>} : memref<32x128xf32, #tpu.memory_space<vmem>>, vector<8x128xf32>,
    %c16 = arith.constant 16 : index
    %c0_34 = arith.constant 0 : index
    %73 = vector.load %arg5[%c16, %c0_34] : memref<32x128xf32, #tpu.memory_space<vmem>>, vector<8x128xf32>
    %74 = vector.shape_cast %57 : vector<16x128xf32> to vector<2x8x128xf32>
    %cst_35 = arith.constant dense<0.000000e+00> : vector<8x128xf32>
    %75 = vector.multi_reduction <add>, %74, %cst_35 [0] : vector<2x8x128xf32> to vector<8x128xf32>
    %76 = arith.addf %73, %75 : vector<8x128xf32>
    %c16_36 = arith.constant 16 : index
    %c0_37 = arith.constant 0 : index
    %77 = vector.load %arg5[%c16_36, %c0_37] : memref<32x128xf32, #tpu.memory_space<vmem>>, vector<8x128xf32>
    tpu.vector_store %arg5[%c16_36, %c0_37], %76 {strides = array<i32>} : memref<32x128xf32, #tpu.memory_space<vmem>>, vector<8x128xf32>,
    %c24 = arith.constant 24 : index
    %c0_38 = arith.constant 0 : index
    %78 = vector.load %arg5[%c24, %c0_38] : memref<32x128xf32, #tpu.memory_space<vmem>>, vector<8x128xf32>
    %79 = vector.shape_cast %62 : vector<16x128xf32> to vector<2x8x128xf32>
    %cst_39 = arith.constant dense<0.000000e+00> : vector<8x128xf32>
    %80 = vector.multi_reduction <add>, %79, %cst_39 [0] : vector<2x8x128xf32> to vector<8x128xf32>
    %81 = arith.addf %78, %80 : vector<8x128xf32>
    %c24_40 = arith.constant 24 : index
    %c0_41 = arith.constant 0 : index
    %82 = vector.load %arg5[%c24_40, %c0_41] : memref<32x128xf32, #tpu.memory_space<vmem>>, vector<8x128xf32>
    tpu.vector_store %arg5[%c24_40, %c0_41], %81 {strides = array<i32>} : memref<32x128xf32, #tpu.memory_space<vmem>>, vector<8x128xf32>,
    return
  }
  func.func @transform_0(%arg0: i32, %arg1: i32) -> (i32, i32) {
    %c1_i32 = arith.constant 1 : i32
    %0 = arith.muli %arg0, %c1_i32 : i32
    %1 = arith.addi %0, %arg1 : i32
    %c0_i32 = arith.constant 0 : i32
    %c0_i32_0 = arith.constant 0 : i32
    return %1, %c0_i32 : i32, i32
  }
  func.func @transform_1(%arg0: i32, %arg1: i32) -> (i32, i32) {
    %c1_i32 = arith.constant 1 : i32
    %0 = arith.muli %arg0, %c1_i32 : i32
    %1 = arith.addi %0, %arg1 : i32
    %c0_i32 = arith.constant 0 : i32
    %c0_i32_0 = arith.constant 0 : i32
    return %1, %c0_i32 : i32, i32
  }
  func.func @transform_2(%arg0: i32, %arg1: i32) -> (i32, i32, i32) {
    %c1_i32 = arith.constant 1 : i32
    %0 = arith.muli %arg0, %c1_i32 : i32
    %1 = arith.addi %0, %arg1 : i32
    %c0_i32 = arith.constant 0 : i32
    %c0_i32_0 = arith.constant 0 : i32
    %c0_i32_1 = arith.constant 0 : i32
    return %c0_i32, %1, %c0_i32_0 : i32, i32, i32
  }
  func.func @transform_3(%arg0: i32, %arg1: i32) -> (i32, i32) {
    %c0_i32 = arith.constant 0 : i32
    %c0_i32_0 = arith.constant 0 : i32
    return %arg0, %c0_i32 : i32, i32
  }
}

</mosaic_0001>

<llo_original>
// kernel: siren_sdf_loss.1
$region0: #{siren_sdf_loss.1}
  #allocation0 [shape = 'u32[]', space=smem, size = 0x4, offset = 0x4, fixed_abs, tag = 'smem constant byte address 0x4 - core index']
  #allocation1 [shape = 'u32[72,128]{1,0:T(1,128)}', space=vmem, size = 0x9000, scoped, tag = 'internal scratch']
  %s0 = inlined_call_operand.vmem [shape: f32[16,128], index: 0, kind: input, shape index: {}]
  %s1 = inlined_call_operand.vmem [shape: f32[16,128], index: 1, kind: input, shape index: {}]
  %s2 = inlined_call_operand.vmem [shape: bf16[6,16,128], index: 2, kind: input, shape index: {}]
  %s3 = inlined_call_operand.vmem [shape: f32[32,128], index: 3, kind: output, shape index: {}]
  %s4 = sld [smem:[#allocation0]]
  $region26: #{siren_sdf_loss.1} parent=0
    _
  %s6 = ssub.s32 1, %s4
  %s7 = scalar_select 0, %s6, %s4
  // Predicated region
  $region2: #{siren_sdf_loss.1} parent=0 // pred_check
    _
  $region3: #{siren_sdf_loss.1} parent=0 // pred_check_branch
    %9 = sbr.rel (0) target = $region5
  $region4: #{siren_sdf_loss.1} parent=0 // pred_region
    %s10 = sadd.s32 0, 0
    %s11 = smul.u32 2, %s10
    %p12 = scmp.lt.s32.totalorder %s11, 1
    %s13 = scalar_select %p12, %s11, 1
    %s14 = smul.addr %s13, 8
    %s15 = scalar_lea.vmem %s0, %s14
    %s16 = sadd.s32 0, 0
    %s17 = smul.u32 2, %s16
  $region5: #{siren_sdf_loss.1} parent=0 // pred_fallthru
    _
  // Predicated region
  $region6: #{siren_sdf_loss.1} parent=0 // pred_check
    _
  $region7: #{siren_sdf_loss.1} parent=0 // pred_check_branch
    %19 = sbr.rel (0) target = $region9
  $region8: #{siren_sdf_loss.1} parent=0 // pred_region
    %s20 = sadd.s32 0, 0
    %s21 = smul.u32 2, %s20
    %p22 = scmp.lt.s32.totalorder %s21, 1
    %s23 = scalar_select %p22, %s21, 1
    %s24 = smul.addr %s23, 8
    %s25 = scalar_lea.vmem %s1, %s24
    %s26 = sadd.s32 0, 0
    %s27 = smul.u32 2, %s26
  $region9: #{siren_sdf_loss.1} parent=0 // pred_fallthru
    _
  // Predicated region
  $region10: #{siren_sdf_loss.1} parent=0 // pred_check
    _
  $region11: #{siren_sdf_loss.1} parent=0 // pred_check_branch
    %29 = sbr.rel (0) target = $region13
  $region12: #{siren_sdf_loss.1} parent=0 // pred_region
    %s30 = sadd.s32 0, 0
    %s31 = smul.u32 2, %s30
    %p32 = scmp.lt.s32.totalorder %s31, 1
    %s33 = scalar_select %p32, %s31, 1
    %s34 = smul.addr %s33, 4
    %s35 = scalar_lea.vmem %s2, %s34
    %s36 = sadd.s32 0, 0
    %s37 = smul.u32 2, %s36
  $region13: #{siren_sdf_loss.1} parent=0 // pred_fallthru
    _
  %s38 = sadd.s32 0, 0
  %s39 = smul.u32 2, %s38
  %p40 = scmp.lt.s32.totalorder %s39, 1
  %s41 = scalar_select %p40, %s39, 1
  %s42 = smul.addr %s41, 8
  %s43 = scalar_lea.vmem %s0, %s42
  %s44 = sadd.s32 0, 0
  %s45 = smul.u32 2, %s44
  %p46 = scmp.lt.s32.totalorder %s45, 1
  %s47 = scalar_select %p46, %s45, 1
  %s48 = smul.addr %s47, 8
  %s49 = scalar_lea.vmem %s1, %s48
  %s50 = sadd.s32 0, 0
  %s51 = smul.u32 2, %s50
  %p52 = scmp.lt.s32.totalorder %s51, 1
  %s53 = scalar_select %p52, %s51, 1
  %s54 = smul.addr %s53, 4
  %s55 = scalar_lea.vmem %s2, %s54
  %s56 = sadd.s32 0, 0
  %s57 = smul.u32 2, %s56
  %p58 = scmp.lt.s32.totalorder %s57, 1
  %s59 = scalar_select %p58, %s57, 1
  %s60 = smul.addr %s59, 8
  %s61 = scalar_lea.vmem %s0, %s60
  %s62 = sadd.s32 0, 0
  %s63 = smul.u32 2, %s62
  %s64 = sadd.s32 0, 0
  %s65 = smul.u32 2, %s64
  %p66 = scmp.lt.s32.totalorder %s65, 1
  %s67 = scalar_select %p66, %s65, 1
  %s68 = smul.addr %s67, 8
  %s69 = scalar_lea.vmem %s1, %s68
  %s70 = sadd.s32 0, 0
  %s71 = smul.u32 2, %s70
  %s72 = sadd.s32 0, 0
  %s73 = smul.u32 2, %s72
  %p74 = scmp.lt.s32.totalorder %s73, 1
  %s75 = scalar_select %p74, %s73, 1
  %s76 = smul.addr %s75, 4
  %s77 = scalar_lea.vmem %s2, %s76
  %s78 = sadd.s32 0, 0
  %s79 = smul.u32 2, %s78
  %p80 = scmp.eq.s32.totalorder 0, 0
  // Predicated region
  $region14: #{siren_sdf_loss.1} parent=0 // pred_check
    %p81 = pneg %p80
  $region15: #{siren_sdf_loss.1} parent=0 // pred_check_branch
    %83 = sbr.rel (%p81) target = $region17
  $region16: #{siren_sdf_loss.1} parent=0 // pred_region
    %84 = vst [vmem:[%s3] sm:$0xff] 0.0
    %85 = vst [vmem:[%s3 + $0x8] sm:$0xff] 0.0
    %86 = vst [vmem:[%s3 + $0x10] sm:$0xff] 0.0
    %87 = vst [vmem:[%s3 + $0x18] sm:$0xff] 0.0
  $region17: #{siren_sdf_loss.1} parent=0 // pred_fallthru
    _
  %v88 = vld [vmem:[%s61] sm:$0xff]
  %v89 = vld [vmem:[%s61 + $0x8] sm:$0xff]
  %v90 = vld [vmem:[%s69] sm:$0xff]
  %v91 = vld [vmem:[%s69 + $0x8] sm:$0xff]
  %v92 = vand.u32 2147483647, %v90
  %v93 = vand.u32 2147483647, %v91
  %v94 = vld [vmem:[%s77] sm:$0xf]
  %v95 = vld [vmem:[%s77 + $0x4] sm:$0xf]
  %v96 = vunpack.c.l.bf16 %v94
  %v97 = vunpack.c.l.bf16 %v95
  %s98 = scalar_lea.vmem %s77, 8
  %v99 = vld [vmem:[%s98] sm:$0xf]
  %v100 = vld [vmem:[%s98 + $0x4] sm:$0xf]
  %v101 = vunpack.c.l.bf16 %v99
  %v102 = vunpack.c.l.bf16 %v100
  %s103 = scalar_lea.vmem %s77, 16
  %v104 = vld [vmem:[%s103] sm:$0xf]
  %v105 = vld [vmem:[%s103 + $0x4] sm:$0xf]
  %v106 = vunpack.c.l.bf16 %v104
  %v107 = vunpack.c.l.bf16 %v105
  %s108 = scalar_lea.vmem %s77, 24
  %v109 = vld [vmem:[%s108] sm:$0xf]
  %v110 = vld [vmem:[%s108 + $0x4] sm:$0xf]
  %v111 = vunpack.c.l.bf16 %v109
  %v112 = vunpack.c.l.bf16 %v110
  %s113 = scalar_lea.vmem %s77, 32
  %v114 = vld [vmem:[%s113] sm:$0xf]
  %v115 = vld [vmem:[%s113 + $0x4] sm:$0xf]
  %v116 = vunpack.c.l.bf16 %v114
  %v117 = vunpack.c.l.bf16 %v115
  %s118 = scalar_lea.vmem %s77, 40
  %v119 = vld [vmem:[%s118] sm:$0xf]
  %v120 = vld [vmem:[%s118 + $0x4] sm:$0xf]
  %v121 = vunpack.c.l.bf16 %v119
  %v122 = vunpack.c.l.bf16 %v120
  %vm123 = vcmp.ne.f32.partialorder %v88, -1.0
  %vm124 = vcmp.ne.f32.partialorder %v89, -1.0
  %v125 = vmul.f32 %v96, %v96
  %v126 = vmul.f32 %v97, %v97
  %v127 = vmul.f32 %v101, %v101
  %v128 = vmul.f32 %v102, %v102
  %v129 = vadd.f32 %v125, %v127
  %v130 = vadd.f32 %v126, %v128
  %v131 = vmul.f32 %v106, %v106
  %v132 = vmul.f32 %v107, %v107
  %v133 = vadd.f32 %v129, %v131
  %v134 = vadd.f32 %v130, %v132
  %v135 = vmul.f32 %v111, %v111
  %v136 = vmul.f32 %v112, %v112
  %v137 = vmul.f32 %v116, %v116
  %v138 = vmul.f32 %v117, %v117
  %v139 = vadd.f32 %v135, %v137
  %v140 = vadd.f32 %v136, %v138
  %v141 = vmul.f32 %v121, %v121
  %v142 = vmul.f32 %v122, %v122
  %v143 = vadd.f32 %v139, %v141
  %v144 = vadd.f32 %v140, %v142
  %v145 = vmul.f32 %v96, %v111
  %v146 = vmul.f32 %v97, %v112
  %v147 = vmul.f32 %v101, %v116
  %v148 = vmul.f32 %v102, %v117
  %v149 = vadd.f32 %v145, %v147
  %v150 = vadd.f32 %v146, %v148
  %v151 = vmul.f32 %v106, %v121
  %v152 = vmul.f32 %v107, %v122
  %v153 = vadd.f32 %v149, %v151
  %v154 = vadd.f32 %v150, %v152
  %v155 = vmax.f32 %v133, 1e-16
  %v156 = vmax.f32 %v134, 1e-16
  %v157 = vmax.f32 %v143, 1e-16
  %v158 = vmax.f32 %v144, 1e-16
  %v159 = vmul.f32 %v155, %v157
  %v160 = vmul.f32 %v156, %v158
  %v161 = vrsqrt.pop %v159
  %v162 = vmul.f32 %v161, %v159
  %v163 = vmul.f32 %v162, %v161
  %v164 = vmul.f32 0.5, %v163
  %v165 = vsub.f32 1.5, %v164
  %v166 = vmul.f32 %v161, %v165
  %vm167 = vweird.f32 %v159
  %vm168 = vweird.f32 %v161
  %vm169 = vmor %vm167, %vm168
  %v170 = vsel %vm169, %v161, %v166
  %v171 = vrsqrt.pop %v160
  %v172 = vmul.f32 %v171, %v160
  %v173 = vmul.f32 %v172, %v171
  %v174 = vmul.f32 0.5, %v173
  %v175 = vsub.f32 1.5, %v174
  %v176 = vmul.f32 %v171, %v175
  %vm177 = vweird.f32 %v160
  %vm178 = vweird.f32 %v171
  %vm179 = vmor %vm177, %vm178
  %v180 = vsel %vm179, %v171, %v176
  %v181 = vmul.f32 %v153, %v170
  %v182 = vmul.f32 %v154, %v180
  %v183 = vrsqrt.pop %v133
  %v184 = vmul.f32 %v183, %v133
  %v185 = vmul.f32 %v184, %v183
  %v186 = vmul.f32 0.5, %v185
  %v187 = vsub.f32 1.5, %v186
  %v188 = vmul.f32 %v183, %v187
  %v189 = vmul.f32 %v133, %v188
  %vm190 = vcmp.eq.f32.partialorder %v133, inf
  %v191 = vsel %vm190, %v133, %v189
  %vm192 = vcmp.eq.f32.partialorder %v133, 0.0
  %v193 = vand.u32 %v133, 2147483648
  %v194 = vsel %vm192, %v193, %v191
  %v195 = vrsqrt.pop %v134
  %v196 = vmul.f32 %v195, %v134
  %v197 = vmul.f32 %v196, %v195
  %v198 = vmul.f32 0.5, %v197
  %v199 = vsub.f32 1.5, %v198
  %v200 = vmul.f32 %v195, %v199
  %v201 = vmul.f32 %v134, %v200
  %vm202 = vcmp.eq.f32.partialorder %v134, inf
  %v203 = vsel %vm202, %v134, %v201
  %vm204 = vcmp.eq.f32.partialorder %v134, 0.0
  %v205 = vand.u32 %v134, 2147483648
  %v206 = vsel %vm204, %v205, %v203
  %v207 = vsub.f32 %v194, 1.0
  %v208 = vsub.f32 %v206, 1.0
  %v209 = vand.u32 2147483647, %v207
  %v210 = vand.u32 2147483647, %v208
  %v211 = vsel %vm123, %v92, 0.0
  %v212 = vsel %vm124, %v93, 0.0
  %v213 = vsub.f32 1.0, %v181
  %v214 = vsub.f32 1.0, %v182
  %v215 = vsel %vm123, %v213, 0.0
  %v216 = vsel %vm124, %v214, 0.0
  %v217 = vmul.f32 %v92, -100.0
  %v218 = vmul.f32 %v93, -100.0
  %v219 = vmul.f32 %v217, 1.442695
  %v220 = vpow.pop %v219
  %v221 = vmul.f32 %v218, 1.442695
  %v222 = vpow.pop %v221
  %v223 = vsel %vm123, 0.0, %v220
  %v224 = vsel %vm124, 0.0, %v222
  %v225 = vld [vmem:[%s3] sm:$0xff]
  %v226 = vadd.f32 %v209, %v210
  %v227 = vadd.f32 %v225, %v226
  %228 = vst [vmem:[%s3] sm:$0xff] %v227
  %v229 = vld [vmem:[%s3 + $0x8] sm:$0xff]
  %v230 = vadd.f32 %v211, %v212
  %v231 = vadd.f32 %v229, %v230
  %232 = vst [vmem:[%s3 + $0x8] sm:$0xff] %v231
  %v233 = vld [vmem:[%s3 + $0x10] sm:$0xff]
  %v234 = vadd.f32 %v215, %v216
  %v235 = vadd.f32 %v233, %v234
  %236 = vst [vmem:[%s3 + $0x10] sm:$0xff] %v235
  %v237 = vld [vmem:[%s3 + $0x18] sm:$0xff]
  %v238 = vadd.f32 %v223, %v224
  %v239 = vadd.f32 %v237, %v238
  %240 = vst [vmem:[%s3 + $0x18] sm:$0xff] %v239
  // Predicated region
  $region18: #{siren_sdf_loss.1} parent=0 // pred_check
    _
  $region19: #{siren_sdf_loss.1} parent=0 // pred_check_branch
    %242 = sbr.rel (0) target = $region21
  $region20: #{siren_sdf_loss.1} parent=0 // pred_region
    _
  $region21: #{siren_sdf_loss.1} parent=0 // pred_fallthru
    _
  // Predicated region
  $region22: #{siren_sdf_loss.1} parent=0 // pred_check
    _
  $region23: #{siren_sdf_loss.1} parent=0 // pred_check_branch
    %244 = sbr.rel (0) target = $region25
  $region24: #{siren_sdf_loss.1} parent=0 // pred_region
    _
  $region25: #{siren_sdf_loss.1} parent=0 // pred_fallthru
    _

</llo_original>
